<compile_context>
chip_gen: v6e
topology: v6e:2x2x1
jax: 0.10.0
libtpu: 0.0.40
codegen_flags: <defaults>
</compile_context>

<pallas_src>
import math

import jax
import jax.numpy as jnp
from jax.experimental import pallas as pl
from jax.experimental.pallas import tpu as pltpu


# ---------------------------------------------------------------------------
# Kernel: feature-major ("batch-in-lanes") layout.
#   x_ref : (in_dim, block_b)  f32   (cast to bf16 in-kernel)
#   wK_ref: (out_features, in_features)  bf16  (PyTorch layout)
#   bK_ref: (out_features, 1)  f32
#   feat_ref: (hidden, block_b), out_ref: (out_dim, block_b)
# ---------------------------------------------------------------------------
def mlp_feature_kernel(x_ref, w1_ref, b1_ref, w2_ref, b2_ref,
                       w3_ref, b3_ref, w4_ref, b4_ref,
                       feat_ref, out_ref):
    # Cast x to the weight dtype (bf16) in-kernel: VPU op, hidden under DMA.
    x = x_ref[...].astype(w1_ref.dtype)

    h = jnp.dot(w1_ref[...], x, preferred_element_type=jnp.float32) + b1_ref[...]
    h = jnp.maximum(h, 0.0)                                            # relu1

    h = jnp.dot(w2_ref[...], h.astype(w2_ref.dtype),
                preferred_element_type=jnp.float32) + b2_ref[...]
    h = jnp.maximum(h, 0.0)                                            # relu2

    h3 = jnp.dot(w3_ref[...], h.astype(w3_ref.dtype),
                 preferred_element_type=jnp.float32) + b3_ref[...]     # fc3 (pre-relu)

    # feature = relu3(fc3 output); out = fc4 applied to the PRE-relu fc3 output.
    feat_ref[...] = jnp.maximum(h3, 0.0).astype(feat_ref.dtype)
    out_ref[...] = (jnp.dot(w4_ref[...], h3.astype(w4_ref.dtype),
                            preferred_element_type=jnp.float32)
                    + b4_ref[...]).astype(out_ref.dtype)


def _round_up(n, m):
    return ((n + m - 1) // m) * m


def _choose_block_b(B):
    # Lane-dim batch tile: multiple of 128 (so all stores are lane-dense),
    # capped at 2048, targeting >= 4 grid steps when the batch allows it
    # (overlap per core + megacore sharding on v7x).  Tiny batches use one
    # full-extent block (block == full dim satisfies the (8,128) rule).
    if B <= 128:
        return B
    return max(128, min(2048, _round_up(pl.cdiv(B, 4), 128)))


def mlp_feature_forward(x, params, *, block_b=None, out_dtype=jnp.float32,
                        use_bf16=True):
    """x: (B, input_dim) float32.  params: PyTorch-layout weights/biases
    (wK: (out_features, in_features), bK: (out_features,)).  Returns
    (feature: (B, hidden), out: (B, output_dim)) like the nn.Module."""
    B, in_dim = x.shape
    hidden, in_dim_w = params["w1"].shape
    out_dim = params["w4"].shape[0]
    assert in_dim_w == in_dim, "w1 must be (hidden, input_dim) (PyTorch layout)"
    assert params["w2"].shape == (hidden, hidden)
    assert params["w3"].shape == (hidden, hidden)
    assert params["w4"].shape == (out_dim, hidden)

    if block_b is None:
        block_b = _choose_block_b(B)
    block_b = min(block_b, B)
    if block_b != B:
        block_b = max(128, _round_up(block_b, 128))

    op_dtype = jnp.bfloat16 if use_bf16 else jnp.float32
    # Weights: tiny (few KiB) one-time cast.  Biases -> (fan_out, 1) f32 columns.
    w = [params[f"w{i}"].astype(op_dtype) for i in range(1, 5)]
    b = [params[f"b{i}"].reshape(-1, 1).astype(jnp.float32) for i in range(1, 5)]

    # Only wrapper layout op: transpose x to (in_dim, B).  B*in_dim elements,
    # negligible next to the output traffic; bf16 cast happens in-kernel.
    x_t = x.T

    grid = (pl.cdiv(B, block_b),)   # ragged tail handled by boundary masking

    def const_spec(arr):
        # Grid-invariant full-array block (weights / biases), default buffering.
        return pl.BlockSpec(tuple(arr.shape), lambda i: (0, 0))

    in_specs = [pl.BlockSpec((in_dim, block_b), lambda i: (0, i))]
    for wi, bi in zip(w, b):
        in_specs.append(const_spec(wi))
        in_specs.append(const_spec(bi))

    out_specs = [
        pl.BlockSpec((hidden, block_b), lambda i: (0, i)),
        pl.BlockSpec((out_dim, block_b), lambda i: (0, i)),
    ]
    out_shapes = (
        jax.ShapeDtypeStruct((hidden, B), out_dtype),    # feature (transposed)
        jax.ShapeDtypeStruct((out_dim, B), out_dtype),   # out     (transposed)
    )

    out_isz = jnp.dtype(out_dtype).itemsize
    w_bytes = sum(int(wi.size) * wi.dtype.itemsize for wi in w) \
        + sum(int(bi.size) * bi.dtype.itemsize for bi in b)
    # Explicit scoped-VMEM limit (double-buffered tiles + weights + headroom);
    # mainly matters on v5e (16 MiB default) if block_b is ever raised.
    per_step = block_b * (in_dim * x.dtype.itemsize + (hidden + out_dim) * out_isz)
    vmem_limit = int(min(100 * 2**20, max(4 * per_step + 4 * w_bytes, 16 * 2**20)))

    flops = 2 * B * (in_dim * hidden + 2 * hidden * hidden + hidden * out_dim)
    bytes_accessed = int(B * in_dim * x.dtype.itemsize + w_bytes
                         + B * (hidden + out_dim) * out_isz)

    feat_t, out_t = pl.pallas_call(
        mlp_feature_kernel,
        grid=grid,
        in_specs=in_specs,
        out_specs=out_specs,
        out_shape=out_shapes,
        compiler_params=pltpu.CompilerParams(
            dimension_semantics=("parallel",),
            vmem_limit_bytes=vmem_limit),
        cost_estimate=pl.CostEstimate(
            flops=flops, transcendentals=0, bytes_accessed=bytes_accessed),
    )(x_t, w[0], b[0], w[1], b[1], w[2], b[2], w[3], b[3])

    # Back to the PyTorch interface (B, features).  A fused consumer could use
    # the feature-major (features, B) slabs directly and skip these transposes.
    return feat_t.T, out_t.T


def init_params(key, input_dim, hidden_dim, output_dim):
    """Deterministic init mimicking PyTorch nn.Linear defaults.
    PyTorch layout: wK is (out_features, in_features), bK is (out_features,)."""
    dims = [(input_dim, hidden_dim), (hidden_dim, hidden_dim),
            (hidden_dim, hidden_dim), (hidden_dim, output_dim)]
    params = {}
    keys = jax.random.split(key, 2 * len(dims))
    for idx, (fan_in, fan_out) in enumerate(dims):
        bound = 1.0 / math.sqrt(fan_in)
        params[f"w{idx + 1}"] = jax.random.uniform(
            keys[2 * idx], (fan_out, fan_in),
            minval=-bound, maxval=bound, dtype=jnp.float32)
        params[f"b{idx + 1}"] = jax.random.uniform(
            keys[2 * idx + 1], (fan_out,),
            minval=-bound, maxval=bound, dtype=jnp.float32)
    return params


def reference_forward(x, p, use_bf16=True):
    op = jnp.bfloat16 if use_bf16 else jnp.float32

    def lin(h, w_, b_):
        return jnp.dot(h.astype(op), w_.T.astype(op),
                       preferred_element_type=jnp.float32) + b_

    h = jnp.maximum(lin(x, p["w1"], p["b1"]), 0.0)
    h = jnp.maximum(lin(h, p["w2"], p["b2"]), 0.0)
    h3 = lin(h, p["w3"], p["b3"])
    feature = jnp.maximum(h3, 0.0)
    out = lin(h3, p["w4"], p["b4"])
    return feature, out


if __name__ == "__main__":
    key = jax.random.PRNGKey(0)
    k_x, k_p = jax.random.split(key)

    batch, input_dim, hidden_dim, output_dim = 256, 16, 32, 8
    x = jax.random.normal(k_x, (batch, input_dim), dtype=jnp.float32)
    params = init_params(k_p, input_dim, hidden_dim, output_dim)

    feature, out = mlp_feature_forward(x, params)   # block_b=128 -> grid=(2,)
    jax.block_until_ready((feature, out))

    assert feature.shape == (batch, hidden_dim)
    assert out.shape == (batch, output_dim)

    # Same-precision reference (bf16 MXU operands, f32 accumulation).
    feat_bf16, out_bf16 = reference_forward(x, params, use_bf16=True)
    assert jnp.allclose(feature, feat_bf16, atol=5e-3, rtol=5e-3)
    assert jnp.allclose(out, out_bf16, atol=5e-3, rtol=5e-3)

    # Pure-f32 reference: loose tolerance, sanity-checks the forward semantics.
    feat_f32, out_f32 = reference_forward(x, params, use_bf16=False)
    assert jnp.allclose(feature, feat_f32, atol=1e-1, rtol=5e-2)
    assert jnp.allclose(out, out_f32, atol=1e-1, rtol=5e-2)

    print("KERNEL_OK")
</pallas_src>

<mosaic_0001>
module attributes {stable_mosaic.version = 11 : i64} {
  func.func @mlp_feature_kernel(%arg0: i32, %arg1: memref<16x128xf32, #tpu.memory_space<vmem>>, %arg2: memref<32x16xbf16, #tpu.memory_space<vmem>>, %arg3: memref<32x1xf32, #tpu.memory_space<vmem>>, %arg4: memref<32x32xbf16, #tpu.memory_space<vmem>>, %arg5: memref<32x1xf32, #tpu.memory_space<vmem>>, %arg6: memref<32x32xbf16, #tpu.memory_space<vmem>>, %arg7: memref<32x1xf32, #tpu.memory_space<vmem>>, %arg8: memref<8x32xbf16, #tpu.memory_space<vmem>>, %arg9: memref<8x1xf32, #tpu.memory_space<vmem>>, %arg10: memref<32x128xf32, #tpu.memory_space<vmem>>, %arg11: memref<8x128xf32, #tpu.memory_space<vmem>>) attributes {dimension_semantics = [#tpu.dimension_semantics<parallel>], iteration_bounds = array<i64: 2>, scalar_prefetch = 0 : i64, scratch_operands = 0 : i64, tpu.core_type = #tpu.core_type<tc>, window_params = [{transform_indices = @transform_0, window_bounds = array<i64: 16, 128>}, {pipeline_mode = #tpu.pipeline_mode<synchronous>, transform_indices = @transform_1, window_bounds = array<i64: 32, 16>}, {pipeline_mode = #tpu.pipeline_mode<synchronous>, transform_indices = @transform_2, window_bounds = array<i64: 32, 1>}, {pipeline_mode = #tpu.pipeline_mode<synchronous>, transform_indices = @transform_3, window_bounds = array<i64: 32, 32>}, {pipeline_mode = #tpu.pipeline_mode<synchronous>, transform_indices = @transform_4, window_bounds = array<i64: 32, 1>}, {pipeline_mode = #tpu.pipeline_mode<synchronous>, transform_indices = @transform_5, window_bounds = array<i64: 32, 32>}, {pipeline_mode = #tpu.pipeline_mode<synchronous>, transform_indices = @transform_6, window_bounds = array<i64: 32, 1>}, {pipeline_mode = #tpu.pipeline_mode<synchronous>, transform_indices = @transform_7, window_bounds = array<i64: 8, 32>}, {pipeline_mode = #tpu.pipeline_mode<synchronous>, transform_indices = @transform_8, window_bounds = array<i64: 8, 1>}, {transform_indices = @transform_9, window_bounds = array<i64: 32, 128>}, {transform_indices = @transform_10, window_bounds = array<i64: 8, 128>}]} {
    %c0 = arith.constant 0 : index
    %c0_0 = arith.constant 0 : index
    %0 = vector.load %arg1[%c0, %c0_0] : memref<16x128xf32, #tpu.memory_space<vmem>>, vector<16x128xf32>
    %1 = arith.truncf %0 : vector<16x128xf32> to vector<16x128xbf16>
    %c0_1 = arith.constant 0 : index
    %c0_2 = arith.constant 0 : index
    %2 = vector.load %arg2[%c0_1, %c0_2] : memref<32x16xbf16, #tpu.memory_space<vmem>>, vector<32x16xbf16>
    %cst = arith.constant dense<0.000000e+00> : vector<32x128xf32>
    %3 = tpu.matmul %2, %1, %cst {dimension_numbers = #tpu.dot_dimension_numbers<[1], [0], [0], [1], [0, 0, 1, 1], [], []>} : vector<32x16xbf16>, vector<16x128xbf16>, vector<32x128xf32> -> vector<32x128xf32>
    %c0_3 = arith.constant 0 : index
    %c0_4 = arith.constant 0 : index
    %4 = vector.load %arg3[%c0_3, %c0_4] : memref<32x1xf32, #tpu.memory_space<vmem>>, vector<32x1xf32>
    %5 = vector.broadcast %4 : vector<32x1xf32> to vector<32x128xf32>
    %6 = arith.addf %3, %5 : vector<32x128xf32>
    %cst_5 = arith.constant 0.000000e+00 : f32
    %7 = vector.broadcast %cst_5 : f32 to vector<32x128xf32>
    %8 = arith.maximumf %6, %7 : vector<32x128xf32>
    %c0_6 = arith.constant 0 : index
    %c0_7 = arith.constant 0 : index
    %9 = vector.load %arg4[%c0_6, %c0_7] : memref<32x32xbf16, #tpu.memory_space<vmem>>, vector<32x32xbf16>
    %10 = arith.truncf %8 : vector<32x128xf32> to vector<32x128xbf16>
    %cst_8 = arith.constant dense<0.000000e+00> : vector<32x128xf32>
    %11 = tpu.matmul %9, %10, %cst_8 {dimension_numbers = #tpu.dot_dimension_numbers<[1], [0], [0], [1], [0, 0, 1, 1], [], []>} : vector<32x32xbf16>, vector<32x128xbf16>, vector<32x128xf32> -> vector<32x128xf32>
    %c0_9 = arith.constant 0 : index
    %c0_10 = arith.constant 0 : index
    %12 = vector.load %arg5[%c0_9, %c0_10] : memref<32x1xf32, #tpu.memory_space<vmem>>, vector<32x1xf32>
    %13 = vector.broadcast %12 : vector<32x1xf32> to vector<32x128xf32>
    %14 = arith.addf %11, %13 : vector<32x128xf32>
    %cst_11 = arith.constant 0.000000e+00 : f32
    %15 = vector.broadcast %cst_11 : f32 to vector<32x128xf32>
    %16 = arith.maximumf %14, %15 : vector<32x128xf32>
    %c0_12 = arith.constant 0 : index
    %c0_13 = arith.constant 0 : index
    %17 = vector.load %arg6[%c0_12, %c0_13] : memref<32x32xbf16, #tpu.memory_space<vmem>>, vector<32x32xbf16>
    %18 = arith.truncf %16 : vector<32x128xf32> to vector<32x128xbf16>
    %cst_14 = arith.constant dense<0.000000e+00> : vector<32x128xf32>
    %19 = tpu.matmul %17, %18, %cst_14 {dimension_numbers = #tpu.dot_dimension_numbers<[1], [0], [0], [1], [0, 0, 1, 1], [], []>} : vector<32x32xbf16>, vector<32x128xbf16>, vector<32x128xf32> -> vector<32x128xf32>
    %c0_15 = arith.constant 0 : index
    %c0_16 = arith.constant 0 : index
    %20 = vector.load %arg7[%c0_15, %c0_16] : memref<32x1xf32, #tpu.memory_space<vmem>>, vector<32x1xf32>
    %21 = vector.broadcast %20 : vector<32x1xf32> to vector<32x128xf32>
    %22 = arith.addf %19, %21 : vector<32x128xf32>
    %cst_17 = arith.constant 0.000000e+00 : f32
    %23 = vector.broadcast %cst_17 : f32 to vector<32x128xf32>
    %24 = arith.maximumf %22, %23 : vector<32x128xf32>
    %c0_18 = arith.constant 0 : index
    %c0_19 = arith.constant 0 : index
    %25 = vector.load %arg10[%c0_18, %c0_19] : memref<32x128xf32, #tpu.memory_space<vmem>>, vector<32x128xf32>
    tpu.vector_store %arg10[%c0_18, %c0_19], %24 {strides = array<i32>} : memref<32x128xf32, #tpu.memory_space<vmem>>, vector<32x128xf32>,
    %c0_20 = arith.constant 0 : index
    %c0_21 = arith.constant 0 : index
    %26 = vector.load %arg8[%c0_20, %c0_21] : memref<8x32xbf16, #tpu.memory_space<vmem>>, vector<8x32xbf16>
    %27 = arith.truncf %22 : vector<32x128xf32> to vector<32x128xbf16>
    %cst_22 = arith.constant dense<0.000000e+00> : vector<8x128xf32>
    %28 = tpu.matmul %26, %27, %cst_22 {dimension_numbers = #tpu.dot_dimension_numbers<[1], [0], [0], [1], [0, 0, 1, 1], [], []>} : vector<8x32xbf16>, vector<32x128xbf16>, vector<8x128xf32> -> vector<8x128xf32>
    %c0_23 = arith.constant 0 : index
    %c0_24 = arith.constant 0 : index
    %29 = vector.load %arg9[%c0_23, %c0_24] : memref<8x1xf32, #tpu.memory_space<vmem>>, vector<8x1xf32>
    %30 = vector.broadcast %29 : vector<8x1xf32> to vector<8x128xf32>
    %31 = arith.addf %28, %30 : vector<8x128xf32>
    %c0_25 = arith.constant 0 : index
    %c0_26 = arith.constant 0 : index
    %32 = vector.load %arg11[%c0_25, %c0_26] : memref<8x128xf32, #tpu.memory_space<vmem>>, vector<8x128xf32>
    tpu.vector_store %arg11[%c0_25, %c0_26], %31 {strides = array<i32>} : memref<8x128xf32, #tpu.memory_space<vmem>>, vector<8x128xf32>,
    return
  }
  func.func @transform_0(%arg0: i32) -> (i32, i32) {
    %c0_i32 = arith.constant 0 : i32
    %c0_i32_0 = arith.constant 0 : i32
    return %c0_i32, %arg0 : i32, i32
  }
  func.func @transform_1(%arg0: i32) -> (i32, i32) {
    %c0_i32 = arith.constant 0 : i32
    %c0_i32_0 = arith.constant 0 : i32
    %c0_i32_1 = arith.constant 0 : i32
    return %c0_i32, %c0_i32_0 : i32, i32
  }
  func.func @transform_2(%arg0: i32) -> (i32, i32) {
    %c0_i32 = arith.constant 0 : i32
    %c0_i32_0 = arith.constant 0 : i32
    %c0_i32_1 = arith.constant 0 : i32
    return %c0_i32, %c0_i32_0 : i32, i32
  }
  func.func @transform_3(%arg0: i32) -> (i32, i32) {
    %c0_i32 = arith.constant 0 : i32
    %c0_i32_0 = arith.constant 0 : i32
    %c0_i32_1 = arith.constant 0 : i32
    return %c0_i32, %c0_i32_0 : i32, i32
  }
  func.func @transform_4(%arg0: i32) -> (i32, i32) {
    %c0_i32 = arith.constant 0 : i32
    %c0_i32_0 = arith.constant 0 : i32
    %c0_i32_1 = arith.constant 0 : i32
    return %c0_i32, %c0_i32_0 : i32, i32
  }
  func.func @transform_5(%arg0: i32) -> (i32, i32) {
    %c0_i32 = arith.constant 0 : i32
    %c0_i32_0 = arith.constant 0 : i32
    %c0_i32_1 = arith.constant 0 : i32
    return %c0_i32, %c0_i32_0 : i32, i32
  }
  func.func @transform_6(%arg0: i32) -> (i32, i32) {
    %c0_i32 = arith.constant 0 : i32
    %c0_i32_0 = arith.constant 0 : i32
    %c0_i32_1 = arith.constant 0 : i32
    return %c0_i32, %c0_i32_0 : i32, i32
  }
  func.func @transform_7(%arg0: i32) -> (i32, i32) {
    %c0_i32 = arith.constant 0 : i32
    %c0_i32_0 = arith.constant 0 : i32
    %c0_i32_1 = arith.constant 0 : i32
    return %c0_i32, %c0_i32_0 : i32, i32
  }
  func.func @transform_8(%arg0: i32) -> (i32, i32) {
    %c0_i32 = arith.constant 0 : i32
    %c0_i32_0 = arith.constant 0 : i32
    %c0_i32_1 = arith.constant 0 : i32
    return %c0_i32, %c0_i32_0 : i32, i32
  }
  func.func @transform_9(%arg0: i32) -> (i32, i32) {
    %c0_i32 = arith.constant 0 : i32
    %c0_i32_0 = arith.constant 0 : i32
    return %c0_i32, %arg0 : i32, i32
  }
  func.func @transform_10(%arg0: i32) -> (i32, i32) {
    %c0_i32 = arith.constant 0 : i32
    %c0_i32_0 = arith.constant 0 : i32
    return %c0_i32, %arg0 : i32, i32
  }
}

</mosaic_0001>

<llo_original>
// kernel: tpu_custom_call.1
$region0: #{tpu_custom_call.1}
  #allocation0 [shape = 'u32[]', space=smem, size = 0x4, offset = 0x4, fixed_abs, tag = 'smem constant byte address 0x4 - core index']
  #allocation1 [shape = 'u32[144,128]{1,0:T(1,128)}', space=vmem, size = 0x12000, scoped, tag = 'internal scratch']
  %s0 = inlined_call_operand.vmem [shape: f32[16,256], index: 0, kind: input, shape index: {}]
  %s1 = inlined_call_operand.vmem [shape: bf16[32,16], index: 1, kind: input, shape index: {}]
  %s2 = inlined_call_operand.vmem [shape: f32[32,1], index: 2, kind: input, shape index: {}]
  %s3 = inlined_call_operand.vmem [shape: bf16[32,32], index: 3, kind: input, shape index: {}]
  %s4 = inlined_call_operand.vmem [shape: f32[32,1], index: 4, kind: input, shape index: {}]
  %s5 = inlined_call_operand.vmem [shape: bf16[32,32], index: 5, kind: input, shape index: {}]
  %s6 = inlined_call_operand.vmem [shape: f32[32,1], index: 6, kind: input, shape index: {}]
  %s7 = inlined_call_operand.vmem [shape: bf16[8,32], index: 7, kind: input, shape index: {}]
  %s8 = inlined_call_operand.vmem [shape: f32[8,1], index: 8, kind: input, shape index: {}]
  %s9 = inlined_call_operand.hbm [shape: f32[32,256], index: 9, kind: output, shape index: {0}]
  %s10 = inlined_call_operand.hbm [shape: f32[8,256], index: 10, kind: output, shape index: {1}]
  %11 = xla_tuple %s9, %s10
  %s12 = sld [smem:[#allocation0]]
  $region115: #{tpu_custom_call.1} parent=0
    _
  %s14 = ssub.s32 1, %s12
  %s15 = scalar_select 0, %s14, %s12
  $region1: #{tpu_custom_call.1} parent=0
    #allocation2 [shape = 'u8[16384]{0}', space=vmem, size = 0x4000, scoped, tag = 'input window, operand 0']
    #allocation3 [shape = 'u8[32768]{0}', space=vmem, size = 0x8000, scoped, tag = 'output window, operand 0']
    #allocation4 [shape = 's32[2]{0}', space=sflag, size = 0x8, scoped, tag = 'scoped memory for tpu_custom_call.1']
    #allocation5 [shape = 'u8[8192]{0}', space=vmem, size = 0x2000, scoped, tag = 'output window, operand 1']
    #allocation6 [shape = 's32[2]{0}', space=sflag, size = 0x8, scoped, tag = 'scoped memory for tpu_custom_call.1']
    %16 = vsyncpa [#allocation4], 0
    %s17 = scalar_lea.sflag [#allocation4], 1
    %18 = vsyncpa %s17, 0
    %19 = vsyncpa [#allocation6], 0
    %s20 = scalar_lea.sflag [#allocation6], 1
    %21 = vsyncpa %s20, 0
    loop: start=0, step=1, limit=4
    $region2: #{tpu_custom_call.1} parent=1 // loop_pre_header
      _
    $region3: #{tpu_custom_call.1} parent=1 // loop_header
      %s23 = sphi 0, %s27
      %p24 = scmp.ge.s32.totalorder %s23, 4
      %s33 = sphi 0, %s35
      %s36 = sphi 0, %s33
      %s37 = sphi 0, %s36
      %s53 = sphi 0, %s37
      %s57 = sphi 0, %s57
      %s59 = sphi 0, %s57
      %s60 = sphi 0, %s59
      %s74 = sphi 0, %s60
      %s78 = sphi 0, %s78
      %s80 = sphi 0, %s78
      %s81 = sphi 0, %s80
      %s95 = sphi 0, %s81
      %s99 = sphi 0, %s99
      %s101 = sphi 0, %s99
      %s102 = sphi 0, %s101
      %s116 = sphi 0, %s102
      %s120 = sphi 0, %s120
      %s122 = sphi 0, %s120
      %s123 = sphi 0, %s122
      %s137 = sphi 0, %s123
      %s141 = sphi 0, %s141
      %s143 = sphi 0, %s141
      %s144 = sphi 0, %s143
      %s158 = sphi 0, %s144
      %s162 = sphi 0, %s162
      %s164 = sphi 0, %s162
      %s165 = sphi 0, %s164
      %s179 = sphi 0, %s165
      %s183 = sphi 0, %s183
      %s185 = sphi 0, %s183
      %s186 = sphi 0, %s185
      %s200 = sphi 0, %s186
      %s204 = sphi 0, %s204
      %s206 = sphi 0, %s204
      %s207 = sphi 0, %s206
      %s221 = sphi 0, %s207
      %s227 = sphi 0, %s229
      %s230 = sphi 0, %s227
      %s231 = sphi 0, %s230
      %s247 = sphi 0, %s231
      %s253 = sphi 0, %s255
      %s256 = sphi 0, %s253
      %s257 = sphi 0, %s256
      %s273 = sphi 0, %s257
    $region4: #{tpu_custom_call.1} parent=1 // loop_header_branch
      %26 = sbr.rel (%p24) target = $region8
    $region5: #{tpu_custom_call.1} parent=1 // loop_body
      %s28 = ssub.s32 %s23, 1
      %s29 = ssub.s32 %s23, 2
      %s30 = sadd.s32 %s23, 1
      %s31 = ssub.s32 %s23, %s30
      %p32 = scmp.eq.s32.totalorder %s31, 0
      %s34 = sadd.s32 %s33, 1
      %s35 = scalar_select %p32, %s33, %s34
      %p38 = pneg %p32
      %p39 = scmp.eq.s32.totalorder %s23, 1
      %p40 = por %p38, %p39
      %p41 = scmp.ne.s32.totalorder %s33, %s36
      %p42 = scmp.eq.s32.totalorder %s23, 0
      %p43 = por %p41, %p42
      %p44 = scmp.ne.s32.totalorder %s33, %s36
      %p45 = scmp.eq.s32.totalorder %s28, 1
      %p46 = por %p44, %p45
      %p47 = scmp.ne.s32.totalorder %s36, %s37
      %p48 = scmp.eq.s32.totalorder %s28, 0
      %p49 = por %p47, %p48
      %p50 = scmp.ne.s32.totalorder %s36, %s37
      %p51 = scmp.eq.s32.totalorder %s29, 1
      %p52 = por %p50, %p51
      %p54 = scmp.ne.s32.totalorder %s37, %s53
      %p55 = scmp.eq.s32.totalorder %s29, 0
      %p56 = por %p54, %p55
      %s58 = sadd.s32 %s57, 1
      %p61 = scmp.eq.s32.totalorder %s23, 1
      %p62 = scmp.ne.s32.totalorder %s57, %s59
      %p63 = scmp.eq.s32.totalorder %s23, 0
      %p64 = por %p62, %p63
      %p65 = scmp.ne.s32.totalorder %s57, %s59
      %p66 = scmp.eq.s32.totalorder %s28, 1
      %p67 = por %p65, %p66
      %p68 = scmp.ne.s32.totalorder %s59, %s60
      %p69 = scmp.eq.s32.totalorder %s28, 0
      %p70 = por %p68, %p69
      %p71 = scmp.ne.s32.totalorder %s59, %s60
      %p72 = scmp.eq.s32.totalorder %s29, 1
      %p73 = por %p71, %p72
      %p75 = scmp.ne.s32.totalorder %s60, %s74
      %p76 = scmp.eq.s32.totalorder %s29, 0
      %p77 = por %p75, %p76
      %s79 = sadd.s32 %s78, 1
      %p82 = scmp.eq.s32.totalorder %s23, 1
      %p83 = scmp.ne.s32.totalorder %s78, %s80
      %p84 = scmp.eq.s32.totalorder %s23, 0
      %p85 = por %p83, %p84
      %p86 = scmp.ne.s32.totalorder %s78, %s80
      %p87 = scmp.eq.s32.totalorder %s28, 1
      %p88 = por %p86, %p87
      %p89 = scmp.ne.s32.totalorder %s80, %s81
      %p90 = scmp.eq.s32.totalorder %s28, 0
      %p91 = por %p89, %p90
      %p92 = scmp.ne.s32.totalorder %s80, %s81
      %p93 = scmp.eq.s32.totalorder %s29, 1
      %p94 = por %p92, %p93
      %p96 = scmp.ne.s32.totalorder %s81, %s95
      %p97 = scmp.eq.s32.totalorder %s29, 0
      %p98 = por %p96, %p97
      %s100 = sadd.s32 %s99, 1
      %p103 = scmp.eq.s32.totalorder %s23, 1
      %p104 = scmp.ne.s32.totalorder %s99, %s101
      %p105 = scmp.eq.s32.totalorder %s23, 0
      %p106 = por %p104, %p105
      %p107 = scmp.ne.s32.totalorder %s99, %s101
      %p108 = scmp.eq.s32.totalorder %s28, 1
      %p109 = por %p107, %p108
      %p110 = scmp.ne.s32.totalorder %s101, %s102
      %p111 = scmp.eq.s32.totalorder %s28, 0
      %p112 = por %p110, %p111
      %p113 = scmp.ne.s32.totalorder %s101, %s102
      %p114 = scmp.eq.s32.totalorder %s29, 1
      %p115 = por %p113, %p114
      %p117 = scmp.ne.s32.totalorder %s102, %s116
      %p118 = scmp.eq.s32.totalorder %s29, 0
      %p119 = por %p117, %p118
      %s121 = sadd.s32 %s120, 1
      %p124 = scmp.eq.s32.totalorder %s23, 1
      %p125 = scmp.ne.s32.totalorder %s120, %s122
      %p126 = scmp.eq.s32.totalorder %s23, 0
      %p127 = por %p125, %p126
      %p128 = scmp.ne.s32.totalorder %s120, %s122
      %p129 = scmp.eq.s32.totalorder %s28, 1
      %p130 = por %p128, %p129
      %p131 = scmp.ne.s32.totalorder %s122, %s123
      %p132 = scmp.eq.s32.totalorder %s28, 0
      %p133 = por %p131, %p132
      %p134 = scmp.ne.s32.totalorder %s122, %s123
      %p135 = scmp.eq.s32.totalorder %s29, 1
      %p136 = por %p134, %p135
      %p138 = scmp.ne.s32.totalorder %s123, %s137
      %p139 = scmp.eq.s32.totalorder %s29, 0
      %p140 = por %p138, %p139
      %s142 = sadd.s32 %s141, 1
      %p145 = scmp.eq.s32.totalorder %s23, 1
      %p146 = scmp.ne.s32.totalorder %s141, %s143
      %p147 = scmp.eq.s32.totalorder %s23, 0
      %p148 = por %p146, %p147
      %p149 = scmp.ne.s32.totalorder %s141, %s143
      %p150 = scmp.eq.s32.totalorder %s28, 1
      %p151 = por %p149, %p150
      %p152 = scmp.ne.s32.totalorder %s143, %s144
      %p153 = scmp.eq.s32.totalorder %s28, 0
      %p154 = por %p152, %p153
      %p155 = scmp.ne.s32.totalorder %s143, %s144
      %p156 = scmp.eq.s32.totalorder %s29, 1
      %p157 = por %p155, %p156
      %p159 = scmp.ne.s32.totalorder %s144, %s158
      %p160 = scmp.eq.s32.totalorder %s29, 0
      %p161 = por %p159, %p160
      %s163 = sadd.s32 %s162, 1
      %p166 = scmp.eq.s32.totalorder %s23, 1
      %p167 = scmp.ne.s32.totalorder %s162, %s164
      %p168 = scmp.eq.s32.totalorder %s23, 0
      %p169 = por %p167, %p168
      %p170 = scmp.ne.s32.totalorder %s162, %s164
      %p171 = scmp.eq.s32.totalorder %s28, 1
      %p172 = por %p170, %p171
      %p173 = scmp.ne.s32.totalorder %s164, %s165
      %p174 = scmp.eq.s32.totalorder %s28, 0
      %p175 = por %p173, %p174
      %p176 = scmp.ne.s32.totalorder %s164, %s165
      %p177 = scmp.eq.s32.totalorder %s29, 1
      %p178 = por %p176, %p177
      %p180 = scmp.ne.s32.totalorder %s165, %s179
      %p181 = scmp.eq.s32.totalorder %s29, 0
      %p182 = por %p180, %p181
      %s184 = sadd.s32 %s183, 1
      %p187 = scmp.eq.s32.totalorder %s23, 1
      %p188 = scmp.ne.s32.totalorder %s183, %s185
      %p189 = scmp.eq.s32.totalorder %s23, 0
      %p190 = por %p188, %p189
      %p191 = scmp.ne.s32.totalorder %s183, %s185
      %p192 = scmp.eq.s32.totalorder %s28, 1
      %p193 = por %p191, %p192
      %p194 = scmp.ne.s32.totalorder %s185, %s186
      %p195 = scmp.eq.s32.totalorder %s28, 0
      %p196 = por %p194, %p195
      %p197 = scmp.ne.s32.totalorder %s185, %s186
      %p198 = scmp.eq.s32.totalorder %s29, 1
      %p199 = por %p197, %p198
      %p201 = scmp.ne.s32.totalorder %s186, %s200
      %p202 = scmp.eq.s32.totalorder %s29, 0
      %p203 = por %p201, %p202
      %s205 = sadd.s32 %s204, 1
      %p208 = scmp.eq.s32.totalorder %s23, 1
      %p209 = scmp.ne.s32.totalorder %s204, %s206
      %p210 = scmp.eq.s32.totalorder %s23, 0
      %p211 = por %p209, %p210
      %p212 = scmp.ne.s32.totalorder %s204, %s206
      %p213 = scmp.eq.s32.totalorder %s28, 1
      %p214 = por %p212, %p213
      %p215 = scmp.ne.s32.totalorder %s206, %s207
      %p216 = scmp.eq.s32.totalorder %s28, 0
      %p217 = por %p215, %p216
      %p218 = scmp.ne.s32.totalorder %s206, %s207
      %p219 = scmp.eq.s32.totalorder %s29, 1
      %p220 = por %p218, %p219
      %p222 = scmp.ne.s32.totalorder %s207, %s221
      %p223 = scmp.eq.s32.totalorder %s29, 0
      %p224 = por %p222, %p223
      %s225 = ssub.s32 %s23, %s30
      %p226 = scmp.eq.s32.totalorder %s225, 0
      %s228 = sadd.s32 %s227, 1
      %s229 = scalar_select %p226, %s227, %s228
      %p232 = pneg %p226
      %p233 = scmp.eq.s32.totalorder %s23, 1
      %p234 = por %p232, %p233
      %p235 = scmp.ne.s32.totalorder %s227, %s230
      %p236 = scmp.eq.s32.totalorder %s23, 0
      %p237 = por %p235, %p236
      %p238 = scmp.ne.s32.totalorder %s227, %s230
      %p239 = scmp.eq.s32.totalorder %s28, 1
      %p240 = por %p238, %p239
      %p241 = scmp.ne.s32.totalorder %s230, %s231
      %p242 = scmp.eq.s32.totalorder %s28, 0
      %p243 = por %p241, %p242
      %p244 = scmp.ne.s32.totalorder %s230, %s231
      %p245 = scmp.eq.s32.totalorder %s29, 1
      %p246 = por %p244, %p245
      %p248 = scmp.ne.s32.totalorder %s231, %s247
      %p249 = scmp.eq.s32.totalorder %s29, 0
      %p250 = por %p248, %p249
      %s251 = ssub.s32 %s23, %s30
      %p252 = scmp.eq.s32.totalorder %s251, 0
      %s254 = sadd.s32 %s253, 1
      %s255 = scalar_select %p252, %s253, %s254
      %p258 = pneg %p252
      %p259 = scmp.eq.s32.totalorder %s23, 1
      %p260 = por %p258, %p259
      %p261 = scmp.ne.s32.totalorder %s253, %s256
      %p262 = scmp.eq.s32.totalorder %s23, 0
      %p263 = por %p261, %p262
      %p264 = scmp.ne.s32.totalorder %s253, %s256
      %p265 = scmp.eq.s32.totalorder %s28, 1
      %p266 = por %p264, %p265
      %p267 = scmp.ne.s32.totalorder %s256, %s257
      %p268 = scmp.eq.s32.totalorder %s28, 0
      %p269 = por %p267, %p268
      %p270 = scmp.ne.s32.totalorder %s256, %s257
      %p271 = scmp.eq.s32.totalorder %s29, 1
      %p272 = por %p270, %p271
      %p274 = scmp.ne.s32.totalorder %s257, %s273
      %p275 = scmp.eq.s32.totalorder %s29, 0
      %p276 = por %p274, %p275
      %p277 = scmp.le.s32.totalorder 1, %s23
      %p278 = scmp.lt.s32.totalorder %s23, 3
      %p279 = pnand %p277, %p278
      %p280 = pneg %p279
      // Predicated region
      $region9: #{tpu_custom_call.1} parent=5 // pred_check
        _
      $region10: #{tpu_custom_call.1} parent=5 // pred_check_branch
        %282 = sbr.rel (%p279) target = $region12
      $region11: #{tpu_custom_call.1} parent=5 // pred_region
        %s283 = ssub.s32 %s23, 1
        // Predicated region
        $region13: #{tpu_custom_call.1} parent=11 // pred_check
          %p284 = pneg %p70
        $region14: #{tpu_custom_call.1} parent=11 // pred_check_branch
          %286 = sbr.rel (%p284) target = $region16
        $region15: #{tpu_custom_call.1} parent=11 // pred_region
          _
        $region16: #{tpu_custom_call.1} parent=11 // pred_fallthru
          _
        // Predicated region
        $region17: #{tpu_custom_call.1} parent=11 // pred_check
          %p287 = pneg %p91
        $region18: #{tpu_custom_call.1} parent=11 // pred_check_branch
          %289 = sbr.rel (%p287) target = $region20
        $region19: #{tpu_custom_call.1} parent=11 // pred_region
          _
        $region20: #{tpu_custom_call.1} parent=11 // pred_fallthru
          _
        // Predicated region
        $region21: #{tpu_custom_call.1} parent=11 // pred_check
          %p290 = pneg %p112
        $region22: #{tpu_custom_call.1} parent=11 // pred_check_branch
          %292 = sbr.rel (%p290) target = $region24
        $region23: #{tpu_custom_call.1} parent=11 // pred_region
          _
        $region24: #{tpu_custom_call.1} parent=11 // pred_fallthru
          _
        // Predicated region
        $region25: #{tpu_custom_call.1} parent=11 // pred_check
          %p293 = pneg %p133
        $region26: #{tpu_custom_call.1} parent=11 // pred_check_branch
          %295 = sbr.rel (%p293) target = $region28
        $region27: #{tpu_custom_call.1} parent=11 // pred_region
          _
        $region28: #{tpu_custom_call.1} parent=11 // pred_fallthru
          _
        // Predicated region
        $region29: #{tpu_custom_call.1} parent=11 // pred_check
          %p296 = pneg %p154
        $region30: #{tpu_custom_call.1} parent=11 // pred_check_branch
          %298 = sbr.rel (%p296) target = $region32
        $region31: #{tpu_custom_call.1} parent=11 // pred_region
          _
        $region32: #{tpu_custom_call.1} parent=11 // pred_fallthru
          _
        // Predicated region
        $region33: #{tpu_custom_call.1} parent=11 // pred_check
          %p299 = pneg %p175
        $region34: #{tpu_custom_call.1} parent=11 // pred_check_branch
          %301 = sbr.rel (%p299) target = $region36
        $region35: #{tpu_custom_call.1} parent=11 // pred_region
          _
        $region36: #{tpu_custom_call.1} parent=11 // pred_fallthru
          _
        // Predicated region
        $region37: #{tpu_custom_call.1} parent=11 // pred_check
          %p302 = pneg %p196
        $region38: #{tpu_custom_call.1} parent=11 // pred_check_branch
          %304 = sbr.rel (%p302) target = $region40
        $region39: #{tpu_custom_call.1} parent=11 // pred_region
          _
        $region40: #{tpu_custom_call.1} parent=11 // pred_fallthru
          _
        // Predicated region
        $region41: #{tpu_custom_call.1} parent=11 // pred_check
          %p305 = pneg %p217
        $region42: #{tpu_custom_call.1} parent=11 // pred_check_branch
          %307 = sbr.rel (%p305) target = $region44
        $region43: #{tpu_custom_call.1} parent=11 // pred_region
          _
        $region44: #{tpu_custom_call.1} parent=11 // pred_fallthru
          _
      $region12: #{tpu_custom_call.1} parent=5 // pred_fallthru
        _
      %p308 = scmp.lt.s32.totalorder %s23, 2
      // Predicated region
      $region45: #{tpu_custom_call.1} parent=5 // pred_check
        %p309 = pneg %p308
      $region46: #{tpu_custom_call.1} parent=5 // pred_check_branch
        %311 = sbr.rel (%p309) target = $region48
      $region47: #{tpu_custom_call.1} parent=5 // pred_region
        // Predicated region
        $region49: #{tpu_custom_call.1} parent=47 // pred_check
          %p312 = pneg %p43
        $region50: #{tpu_custom_call.1} parent=47 // pred_check_branch
          %314 = sbr.rel (%p312) target = $region52
        $region51: #{tpu_custom_call.1} parent=47 // pred_region
          %s315 = sand.u32 %s33, 1
          %s316 = sand.u32 %s33, 1
          %s317 = smul.addr %s316, 16
          %s318 = scalar_lea.vmem [#allocation2], %s317
          %s319 = smul.addr %s23, 8
          %s320 = scalar_lea.vmem %s0, %s319
          // Predicated region
          $region53: #{tpu_custom_call.1} parent=51 // pred_check
            _
          $region54: #{tpu_custom_call.1} parent=51 // pred_check_branch
            %322 = sbr.rel (0) target = $region56
          $region55: #{tpu_custom_call.1} parent=51 // pred_region
            // Predicated region
            $region57: #{tpu_custom_call.1} parent=55 // pred_check
              _
            $region58: #{tpu_custom_call.1} parent=55 // pred_check_branch
              %324 = sbr.rel (0) target = $region60
            $region59: #{tpu_custom_call.1} parent=55 // pred_region
              // Predicated region
              $region72: #{tpu_custom_call.1} parent=59 // pred_check
                _
              $region73: #{tpu_custom_call.1} parent=59 // pred_check_branch
                %342 = sbr.rel (0) target = $region75
              $region74: #{tpu_custom_call.1} parent=59 // pred_region
                loop: start=0, step=1, limit=1
                $region76: #{tpu_custom_call.1} parent=74 // loop_pre_header
                  _
                $region77: #{tpu_custom_call.1} parent=74 // loop_header
                  %s344 = sphi 0, %s348
                  %p345 = scmp.ge.s32.totalorder %s344, 1
                  %s349 = sphi %s320, %s320
                  %s350 = sphi %s318, %s318
                $region78: #{tpu_custom_call.1} parent=74 // loop_header_branch
                  %347 = sbr.rel (%p345) target = $region82
                $region79: #{tpu_custom_call.1} parent=74 // loop_body
                  %v351 = vld [vmem:[%s349] sm:$0xff]
                  %352 = vst [vmem:[%s350] sm:$0xff] %v351
                  %v353 = vld [vmem:[%s349 + $0x10] sm:$0xff]
                  %354 = vst [vmem:[%s350 + $0x8] sm:$0xff] %v353
                $region80: #{tpu_custom_call.1} parent=74 // loop_footer
                  %s348 = sadd.s32 1, %s344
                $region81: #{tpu_custom_call.1} parent=74 // loop_footer_branch
                  %343 = sbr.rel target = $region77
                $region82: #{tpu_custom_call.1} parent=74 // loop_exit
                  _
              $region75: #{tpu_custom_call.1} parent=59 // pred_fallthru
                _
              // Predicated region
              $region83: #{tpu_custom_call.1} parent=59 // pred_check
                _
              $region84: #{tpu_custom_call.1} parent=59 // pred_check_branch
                %356 = sbr.rel target = $region86
              $region85: #{tpu_custom_call.1} parent=59 // pred_region
                _
              $region86: #{tpu_custom_call.1} parent=59 // pred_fallthru
                _
            $region60: #{tpu_custom_call.1} parent=55 // pred_fallthru
              _
            // Predicated region
            $region61: #{tpu_custom_call.1} parent=55 // pred_check
              _
            $region62: #{tpu_custom_call.1} parent=55 // pred_check_branch
              %326 = sbr.rel target = $region64
            $region63: #{tpu_custom_call.1} parent=55 // pred_region
              %s328 = ssub.s32 256, 1
              loop: start=0, step=1, limit=1
              $region65: #{tpu_custom_call.1} parent=63 // loop_pre_header
                _
              $region66: #{tpu_custom_call.1} parent=63 // loop_header
                %s330 = sphi 0, %s334
                %p331 = scmp.ge.s32.totalorder %s330, 1
                %s335 = sphi %s320, %s320
                %s336 = sphi %s318, %s318
              $region67: #{tpu_custom_call.1} parent=63 // loop_header_branch
                %333 = sbr.rel (%p331) target = $region71
              $region68: #{tpu_custom_call.1} parent=63 // loop_body
                %v337 = vld [vmem:[%s335] sm:%s328]
                %338 = vst [vmem:[%s336] sm:%s328] %v337
                %v339 = vld [vmem:[%s335 + $0x10] sm:%s328]
                %340 = vst [vmem:[%s336 + $0x8] sm:%s328] %v339
              $region69: #{tpu_custom_call.1} parent=63 // loop_footer
                %s334 = sadd.s32 1, %s330
              $region70: #{tpu_custom_call.1} parent=63 // loop_footer_branch
                %329 = sbr.rel target = $region66
              $region71: #{tpu_custom_call.1} parent=63 // loop_exit
                _
            $region64: #{tpu_custom_call.1} parent=55 // pred_fallthru
              _
          $region56: #{tpu_custom_call.1} parent=51 // pred_fallthru
            _
          %357 = vnop
        $region52: #{tpu_custom_call.1} parent=47 // pred_fallthru
          _
      $region48: #{tpu_custom_call.1} parent=5 // pred_fallthru
        _
      %p358 = scmp.le.s32.totalorder 1, %s23
      %p359 = scmp.lt.s32.totalorder %s23, 3
      %p360 = pnand %p358, %p359
      %p361 = pneg %p360
      // Predicated region
      $region87: #{tpu_custom_call.1} parent=5 // pred_check
        _
      $region88: #{tpu_custom_call.1} parent=5 // pred_check_branch
        %363 = sbr.rel (%p360) target = $region90
      $region89: #{tpu_custom_call.1} parent=5 // pred_region
        %s364 = ssub.s32 %s23, 1
        %s365 = sand.u32 %s36, 1
        %s366 = sand.u32 %s36, 1
        %s367 = smul.addr %s366, 16
        %s368 = scalar_lea.vmem [#allocation2], %s367
        // Predicated region
        $region91: #{tpu_custom_call.1} parent=89 // pred_check
          %p369 = pneg %p49
        $region92: #{tpu_custom_call.1} parent=89 // pred_check_branch
          %371 = sbr.rel (%p369) target = $region94
        $region93: #{tpu_custom_call.1} parent=89 // pred_region
          _
        $region94: #{tpu_custom_call.1} parent=89 // pred_fallthru
          _
        %s372 = sand.u32 %s36, 1
        %s373 = sand.u32 %s36, 1
        %s374 = smul.addr %s373, 16
        %s375 = scalar_lea.vmem [#allocation2], %s374
        %p376 = pneg %p49
        %p377 = pneg %p46
        %p378 = pneg %p70
        %p379 = pneg %p67
        %p380 = pneg %p91
        %p381 = pneg %p88
        %p382 = pneg %p112
        %p383 = pneg %p109
        %p384 = pneg %p133
        %p385 = pneg %p130
        %p386 = pneg %p154
        %p387 = pneg %p151
        %p388 = pneg %p175
        %p389 = pneg %p172
        %p390 = pneg %p196
        %p391 = pneg %p193
        %p392 = pneg %p217
        %p393 = pneg %p214
        %p394 = pneg %p243
        %p395 = pneg %p240
        %s396 = sand.u32 %s230, 1
        %s397 = scalar_lea.sflag [#allocation4], %s396
        %s398 = sand.u32 %s230, 1
        %s399 = smul.addr %s398, 32
        %s400 = scalar_lea.vmem [#allocation3], %s399
        %p401 = pneg %p269
        %p402 = pneg %p266
        %s403 = sand.u32 %s256, 1
        %s404 = scalar_lea.sflag [#allocation6], %s403
        %s405 = sand.u32 %s256, 1
        %s406 = smul.addr %s405, 8
        %s407 = scalar_lea.vmem [#allocation5], %s406
        %v409 = vld [vmem:[%s368] sm:$0xff]
        %v410 = vld [vmem:[%s368 + $0x8] sm:$0xff]
        %v411 = vpack.c.bf16 %v410, %v409
        %v412 = vld [vmem:[%s1] sm:$0xf]
        %v413 = vld [vmem:[%s1 + $0x4] sm:$0xf]
        %v414 = vld [vmem:[%s1 + $0x8] sm:$0xf]
        %v415 = vld [vmem:[%s1 + $0xc] sm:$0xf]
        %v416 = vld [vmem:[%s2] sm:$0xff]
        %v417 = vld [vmem:[%s2 + $0x8] sm:$0xff]
        %v418 = vld [vmem:[%s2 + $0x10] sm:$0xff]
        %v419 = vld [vmem:[%s2 + $0x18] sm:$0xff]
        %421 = vset.pattern.permute.xlu0 0
        %422 = vperm.xlu0 %421, %v416
        %v423 = vpop.permute.xlu0 %422
        %426 = vset.pattern.permute.xlu0 0
        %427 = vperm.xlu0 %426, %v417
        %v428 = vpop.permute.xlu0 %427
        %431 = vset.pattern.permute.xlu0 0
        %432 = vperm.xlu0 %431, %v418
        %v433 = vpop.permute.xlu0 %432
        %436 = vset.pattern.permute.xlu0 0
        %437 = vperm.xlu0 %436, %v419
        %v438 = vpop.permute.xlu0 %437
        %v444 = vunpack.c.l.b16 %v412
        %v445 = vunpack.c.l.b16 %v413
        %v446 = vunpack.c.l.b16 %v414
        %v447 = vunpack.c.l.b16 %v415
        %v448 = vpack.c.b16 %v445, %v444
        %v449 = vpack.c.b16 %v447, %v446
        %vm450 = vcmask 130048
        %v452 = vsel %vm450, %v448, 0
        %v455 = vsel %vm450, %v449, 0
        %457 = vmatprep.subr.bf16.mxu0 0
        %458 = vmatpush1.bf16.msra.mxu0 0
        %459 = vmatprep.subr.bf16.mxu0 0
        %460 = vmatpush1.bf16.msra.mxu0 0
        %461 = vmatprep.subr.bf16.mxu0 0
        %462 = vmatpush1.bf16.msra.mxu0 0
        %463 = vmatprep.subr.bf16.mxu0 0
        %464 = vmatpush1.bf16.msra.mxu0 0
        %465 = vmatprep.subr.bf16.mxu0 0
        %466 = vmatpush1.bf16.msra.mxu0 0
        %467 = vmatprep.subr.bf16.mxu0 0
        %468 = vmatpush1.bf16.msra.mxu0 0
        %469 = vmatprep.subr.bf16.mxu0 0
        %470 = vmatpush1.bf16.msra.mxu0 0
        %471 = vmatprep.subr.bf16.mxu0 0
        %472 = vmatpush1.bf16.msra.mxu0 %v411
        %473 = vmatprep.subr.bf16.mxu0 0
        %474 = vmatpush2.bf16.msra.mxu0 0
        %475 = vmatprep.subr.bf16.mxu0 0
        %476 = vmatpush2.bf16.msra.mxu0 0
        %477 = vmatprep.subr.bf16.mxu0 0
        %478 = vmatpush2.bf16.msra.mxu0 0
        %479 = vmatprep.subr.bf16.mxu0 0
        %480 = vmatpush2.bf16.msra.mxu0 0
        %481 = vmatprep.subr.bf16.mxu0 0
        %482 = vmatpush2.bf16.msra.mxu0 0
        %483 = vmatprep.subr.bf16.mxu0 0
        %484 = vmatpush2.bf16.msra.mxu0 0
        %485 = vmatprep.subr.bf16.mxu0 0
        %486 = vmatpush2.bf16.msra.mxu0 0
        %487 = vmatprep.subr.bf16.mxu0 0
        %488 = vmatpush2.bf16.msra.mxu0 0
        %489 = vmatprep.mubr.bf16.mxu0 0
        %490 = vmatmul.mubr.bf16.gmra.mxu0 %v452
        %v491 = vpop.f32.mrf.mxu0
        %v492 = vadd.f32 %v423, %v491
        %v493 = vpop.f32.mrf.mxu0
        %v494 = vpop.f32.mrf.mxu0
        %v495 = vadd.f32 %v428, %v494
        %v496 = vpop.f32.mrf.mxu0
        %497 = vmatprep.mubr.bf16.mxu0 0
        %498 = vmatmul.mubr.bf16.gmra.mxu0 %v455
        %v499 = vpop.f32.mrf.mxu0
        %v500 = vadd.f32 %v433, %v499
        %v501 = vpop.f32.mrf.mxu0
        %v502 = vpop.f32.mrf.mxu0
        %v503 = vadd.f32 %v438, %v502
        %v504 = vpop.f32.mrf.mxu0
        %505 = vdwg.mxu0
        %v506 = vmax.f32 %v492, 0.0
        %v507 = vmax.f32 %v495, 0.0
        %v508 = vmax.f32 %v500, 0.0
        %v509 = vmax.f32 %v503, 0.0
        %v510 = vld [vmem:[%s3] sm:$0xf]
        %v511 = vld [vmem:[%s3 + $0x4] sm:$0xf]
        %v512 = vld [vmem:[%s3 + $0x8] sm:$0xf]
        %v513 = vld [vmem:[%s3 + $0xc] sm:$0xf]
        %v514 = vpack.c.bf16 %v507, %v506
        %v515 = vpack.c.bf16 %v509, %v508
        %v516 = vld [vmem:[%s4] sm:$0xff]
        %v517 = vld [vmem:[%s4 + $0x8] sm:$0xff]
        %v518 = vld [vmem:[%s4 + $0x10] sm:$0xff]
        %v519 = vld [vmem:[%s4 + $0x18] sm:$0xff]
        %521 = vset.pattern.permute.xlu0 0
        %522 = vperm.xlu0 %521, %v516
        %v523 = vpop.permute.xlu0 %522
        %526 = vset.pattern.permute.xlu0 0
        %527 = vperm.xlu0 %526, %v517
        %v528 = vpop.permute.xlu0 %527
        %531 = vset.pattern.permute.xlu0 0
        %532 = vperm.xlu0 %531, %v518
        %v533 = vpop.permute.xlu0 %532
        %536 = vset.pattern.permute.xlu0 0
        %537 = vperm.xlu0 %536, %v519
        %v538 = vpop.permute.xlu0 %537
        %v544 = vunpack.c.l.b16 %v510
        %v545 = vunpack.c.l.b16 %v511
        %v546 = vunpack.c.l.b16 %v512
        %v547 = vunpack.c.l.b16 %v513
        %v548 = vpack.c.b16 %v545, %v544
        %v549 = vpack.c.b16 %v547, %v546
        %vm550 = vcmask 261120
        %v552 = vsel %vm550, %v548, 0
        %v555 = vsel %vm550, %v549, 0
        %557 = vmatprep.subr.bf16.mxu0 0
        %558 = vmatpush1.bf16.msra.mxu0 0
        %559 = vmatprep.subr.bf16.mxu0 0
        %560 = vmatpush1.bf16.msra.mxu0 0
        %561 = vmatprep.subr.bf16.mxu0 0
        %562 = vmatpush1.bf16.msra.mxu0 0
        %563 = vmatprep.subr.bf16.mxu0 0
        %564 = vmatpush1.bf16.msra.mxu0 0
        %565 = vmatprep.subr.bf16.mxu0 0
        %566 = vmatpush1.bf16.msra.mxu0 0
        %567 = vmatprep.subr.bf16.mxu0 0
        %568 = vmatpush1.bf16.msra.mxu0 0
        %569 = vmatprep.subr.bf16.mxu0 0
        %570 = vmatpush1.bf16.msra.mxu0 %v515
        %571 = vmatprep.subr.bf16.mxu0 0
        %572 = vmatpush1.bf16.msra.mxu0 %v514
        %573 = vmatprep.subr.bf16.mxu0 0
        %574 = vmatpush2.bf16.msra.mxu0 0
        %575 = vmatprep.subr.bf16.mxu0 0
        %576 = vmatpush2.bf16.msra.mxu0 0
        %577 = vmatprep.subr.bf16.mxu0 0
        %578 = vmatpush2.bf16.msra.mxu0 0
        %579 = vmatprep.subr.bf16.mxu0 0
        %580 = vmatpush2.bf16.msra.mxu0 0
        %581 = vmatprep.subr.bf16.mxu0 0
        %582 = vmatpush2.bf16.msra.mxu0 0
        %583 = vmatprep.subr.bf16.mxu0 0
        %584 = vmatpush2.bf16.msra.mxu0 0
        %585 = vmatprep.subr.bf16.mxu0 0
        %586 = vmatpush2.bf16.msra.mxu0 0
        %587 = vmatprep.subr.bf16.mxu0 0
        %588 = vmatpush2.bf16.msra.mxu0 0
        %589 = vmatprep.mubr.bf16.mxu0 0
        %590 = vmatmul.mubr.bf16.gmra.mxu0 %v552
        %v591 = vpop.f32.mrf.mxu0
        %v592 = vadd.f32 %v523, %v591
        %v593 = vpop.f32.mrf.mxu0
        %v594 = vpop.f32.mrf.mxu0
        %v595 = vadd.f32 %v528, %v594
        %v596 = vpop.f32.mrf.mxu0
        %597 = vmatprep.mubr.bf16.mxu0 0
        %598 = vmatmul.mubr.bf16.gmra.mxu0 %v555
        %v599 = vpop.f32.mrf.mxu0
        %v600 = vadd.f32 %v533, %v599
        %v601 = vpop.f32.mrf.mxu0
        %v602 = vpop.f32.mrf.mxu0
        %v603 = vadd.f32 %v538, %v602
        %v604 = vpop.f32.mrf.mxu0
        %605 = vdwg.mxu0
        %v606 = vmax.f32 %v592, 0.0
        %v607 = vmax.f32 %v595, 0.0
        %v608 = vmax.f32 %v600, 0.0
        %v609 = vmax.f32 %v603, 0.0
        %v610 = vld [vmem:[%s5] sm:$0xf]
        %v611 = vld [vmem:[%s5 + $0x4] sm:$0xf]
        %v612 = vld [vmem:[%s5 + $0x8] sm:$0xf]
        %v613 = vld [vmem:[%s5 + $0xc] sm:$0xf]
        %v614 = vpack.c.bf16 %v607, %v606
        %v615 = vpack.c.bf16 %v609, %v608
        %v616 = vld [vmem:[%s6] sm:$0xff]
        %v617 = vld [vmem:[%s6 + $0x8] sm:$0xff]
        %v618 = vld [vmem:[%s6 + $0x10] sm:$0xff]
        %v619 = vld [vmem:[%s6 + $0x18] sm:$0xff]
        %621 = vset.pattern.permute.xlu0 0
        %622 = vperm.xlu0 %621, %v616
        %v623 = vpop.permute.xlu0 %622
        %626 = vset.pattern.permute.xlu0 0
        %627 = vperm.xlu0 %626, %v617
        %v628 = vpop.permute.xlu0 %627
        %631 = vset.pattern.permute.xlu0 0
        %632 = vperm.xlu0 %631, %v618
        %v633 = vpop.permute.xlu0 %632
        %636 = vset.pattern.permute.xlu0 0
        %637 = vperm.xlu0 %636, %v619
        %v638 = vpop.permute.xlu0 %637
        %v644 = vunpack.c.l.b16 %v610
        %v645 = vunpack.c.l.b16 %v611
        %v646 = vunpack.c.l.b16 %v612
        %v647 = vunpack.c.l.b16 %v613
        %v648 = vpack.c.b16 %v645, %v644
        %v649 = vpack.c.b16 %v647, %v646
        %v651 = vsel %vm550, %v648, 0
        %v654 = vsel %vm550, %v649, 0
        %656 = vmatprep.subr.bf16.mxu0 0
        %657 = vmatpush1.bf16.msra.mxu0 0
        %658 = vmatprep.subr.bf16.mxu0 0
        %659 = vmatpush1.bf16.msra.mxu0 0
        %660 = vmatprep.subr.bf16.mxu0 0
        %661 = vmatpush1.bf16.msra.mxu0 0
        %662 = vmatprep.subr.bf16.mxu0 0
        %663 = vmatpush1.bf16.msra.mxu0 0
        %664 = vmatprep.subr.bf16.mxu0 0
        %665 = vmatpush1.bf16.msra.mxu0 0
        %666 = vmatprep.subr.bf16.mxu0 0
        %667 = vmatpush1.bf16.msra.mxu0 0
        %668 = vmatprep.subr.bf16.mxu0 0
        %669 = vmatpush1.bf16.msra.mxu0 %v615
        %670 = vmatprep.subr.bf16.mxu0 0
        %671 = vmatpush1.bf16.msra.mxu0 %v614
        %672 = vmatprep.subr.bf16.mxu0 0
        %673 = vmatpush2.bf16.msra.mxu0 0
        %674 = vmatprep.subr.bf16.mxu0 0
        %675 = vmatpush2.bf16.msra.mxu0 0
        %676 = vmatprep.subr.bf16.mxu0 0
        %677 = vmatpush2.bf16.msra.mxu0 0
        %678 = vmatprep.subr.bf16.mxu0 0
        %679 = vmatpush2.bf16.msra.mxu0 0
        %680 = vmatprep.subr.bf16.mxu0 0
        %681 = vmatpush2.bf16.msra.mxu0 0
        %682 = vmatprep.subr.bf16.mxu0 0
        %683 = vmatpush2.bf16.msra.mxu0 0
        %684 = vmatprep.subr.bf16.mxu0 0
        %685 = vmatpush2.bf16.msra.mxu0 0
        %686 = vmatprep.subr.bf16.mxu0 0
        %687 = vmatpush2.bf16.msra.mxu0 0
        %688 = vmatprep.mubr.bf16.mxu0 0
        %689 = vmatmul.mubr.bf16.gmra.mxu0 %v651
        %v690 = vpop.f32.mrf.mxu0
        %v691 = vadd.f32 %v623, %v690
        %v692 = vpop.f32.mrf.mxu0
        %v693 = vpop.f32.mrf.mxu0
        %v694 = vadd.f32 %v628, %v693
        %v695 = vpop.f32.mrf.mxu0
        %696 = vmatprep.mubr.bf16.mxu0 0
        %697 = vmatmul.mubr.bf16.gmra.mxu0 %v654
        %v698 = vpop.f32.mrf.mxu0
        %v699 = vadd.f32 %v633, %v698
        %v700 = vpop.f32.mrf.mxu0
        %v701 = vpop.f32.mrf.mxu0
        %v702 = vadd.f32 %v638, %v701
        %v703 = vpop.f32.mrf.mxu0
        %704 = vdwg.mxu0
        %v705 = vmax.f32 %v691, 0.0
        %v706 = vmax.f32 %v694, 0.0
        %v707 = vmax.f32 %v699, 0.0
        %v708 = vmax.f32 %v702, 0.0
        %709 = vst [vmem:[%s400] sm:$0xff] %v705
        %710 = vst [vmem:[%s400 + $0x8] sm:$0xff] %v706
        %711 = vst [vmem:[%s400 + $0x10] sm:$0xff] %v707
        %712 = vst [vmem:[%s400 + $0x18] sm:$0xff] %v708
        %v713 = vld [vmem:[%s7] sm:$0xf]
        %v714 = vpack.c.bf16 %v694, %v691
        %v715 = vpack.c.bf16 %v702, %v699
        %v716 = vld [vmem:[%s8] sm:$0xff]
        %718 = vset.pattern.permute.xlu0 0
        %719 = vperm.xlu0 %718, %v716
        %v720 = vpop.permute.xlu0 %719
        %v723 = vsel %vm550, %v713, 0
        %725 = vmatprep.subr.bf16.mxu0 0
        %726 = vmatpush1.bf16.msra.mxu0 0
        %727 = vmatprep.subr.bf16.mxu0 0
        %728 = vmatpush1.bf16.msra.mxu0 0
        %729 = vmatprep.subr.bf16.mxu0 0
        %730 = vmatpush1.bf16.msra.mxu0 0
        %731 = vmatprep.subr.bf16.mxu0 0
        %732 = vmatpush1.bf16.msra.mxu0 0
        %733 = vmatprep.subr.bf16.mxu0 0
        %734 = vmatpush1.bf16.msra.mxu0 0
        %735 = vmatprep.subr.bf16.mxu0 0
        %736 = vmatpush1.bf16.msra.mxu0 0
        %737 = vmatprep.subr.bf16.mxu0 0
        %738 = vmatpush1.bf16.msra.mxu0 %v715
        %739 = vmatprep.subr.bf16.mxu0 0
        %740 = vmatpush1.bf16.msra.mxu0 %v714
        %741 = vmatprep.subr.bf16.mxu0 0
        %742 = vmatpush2.bf16.msra.mxu0 0
        %743 = vmatprep.subr.bf16.mxu0 0
        %744 = vmatpush2.bf16.msra.mxu0 0
        %745 = vmatprep.subr.bf16.mxu0 0
        %746 = vmatpush2.bf16.msra.mxu0 0
        %747 = vmatprep.subr.bf16.mxu0 0
        %748 = vmatpush2.bf16.msra.mxu0 0
        %749 = vmatprep.subr.bf16.mxu0 0
        %750 = vmatpush2.bf16.msra.mxu0 0
        %751 = vmatprep.subr.bf16.mxu0 0
        %752 = vmatpush2.bf16.msra.mxu0 0
        %753 = vmatprep.subr.bf16.mxu0 0
        %754 = vmatpush2.bf16.msra.mxu0 0
        %755 = vmatprep.subr.bf16.mxu0 0
        %756 = vmatpush2.bf16.msra.mxu0 0
        %757 = vmatprep.mubr.bf16.mxu0 0
        %758 = vmatmul.mubr.bf16.gmra.mxu0 %v723
        %v759 = vpop.f32.mrf.mxu0
        %v760 = vadd.f32 %v720, %v759
        %v761 = vpop.f32.mrf.mxu0
        %v762 = vpop.f32.mrf.mxu0
        %v763 = vpop.f32.mrf.mxu0
        %764 = vdwg.mxu0
        %765 = vst [vmem:[%s407] sm:$0xff] %v760
        %s766 = sand.u32 %s230, 1
        %s767 = scalar_lea.sflag [#allocation4], %s766
        %s768 = sand.u32 %s230, 1
        %s769 = smul.addr %s768, 32
        %s770 = scalar_lea.vmem [#allocation3], %s769
        %s771 = sand.u32 %s256, 1
        %s772 = scalar_lea.sflag [#allocation6], %s771
        %s773 = sand.u32 %s256, 1
        %s774 = smul.addr %s773, 8
        %s775 = scalar_lea.vmem [#allocation5], %s774
        // Predicated region
        $region95: #{tpu_custom_call.1} parent=89 // pred_check
          %p776 = pneg %p240
        $region96: #{tpu_custom_call.1} parent=89 // pred_check_branch
          %778 = sbr.rel (%p776) target = $region98
        $region97: #{tpu_custom_call.1} parent=89 // pred_region
          %s780 = ssub.s32 512, 512
          %781 = vsyncadd %s767, %s780
          %s782 = smul.addr %s28, 128
          %s783 = scalar_lea.hbm %s9, %s782
          %s784 = sshll.u32 %s770, 4
          %s785 = int_to_ptr.vmem [resolvable:$true] %s784
          %790 = dma.vmem_to_hbm [thread:$0]  %s785, 512, %s783, %s767, 128, 256, 8
        $region98: #{tpu_custom_call.1} parent=89 // pred_fallthru
          _
        // Predicated region
        $region99: #{tpu_custom_call.1} parent=89 // pred_check
          %p791 = pneg %p266
        $region100: #{tpu_custom_call.1} parent=89 // pred_check_branch
          %793 = sbr.rel (%p791) target = $region102
        $region101: #{tpu_custom_call.1} parent=89 // pred_region
          %s795 = ssub.s32 128, 128
          %796 = vsyncadd %s772, %s795
          %s797 = smul.addr %s28, 128
          %s798 = scalar_lea.hbm %s10, %s797
          %s800 = sshll.u32 %s775, 4
          %s801 = int_to_ptr.vmem [resolvable:$true] %s800
          %803 = dma.vmem_to_hbm [thread:$0]  %s801, 128, %s798, %s772
        $region102: #{tpu_custom_call.1} parent=89 // pred_fallthru
          _
      $region90: #{tpu_custom_call.1} parent=5 // pred_fallthru
        _
      %p804 = scmp.le.s32.totalorder 2, %s23
      // Predicated region
      $region103: #{tpu_custom_call.1} parent=5 // pred_check
        %p805 = pneg %p804
      $region104: #{tpu_custom_call.1} parent=5 // pred_check_branch
        %807 = sbr.rel (%p805) target = $region106
      $region105: #{tpu_custom_call.1} parent=5 // pred_region
        %s808 = ssub.s32 %s23, 2
        // Predicated region
        $region107: #{tpu_custom_call.1} parent=105 // pred_check
          %p809 = pneg %p246
        $region108: #{tpu_custom_call.1} parent=105 // pred_check_branch
          %811 = sbr.rel (%p809) target = $region110
        $region109: #{tpu_custom_call.1} parent=105 // pred_region
          %s812 = sand.u32 %s231, 1
          %s813 = scalar_lea.sflag [#allocation4], %s812
          %s814 = sand.u32 %s231, 1
          %s815 = smul.addr %s814, 32
          %s816 = scalar_lea.vmem [#allocation3], %s815
          %817 = dma.done %s813, 512
        $region110: #{tpu_custom_call.1} parent=105 // pred_fallthru
          _
        // Predicated region
        $region111: #{tpu_custom_call.1} parent=105 // pred_check
          %p818 = pneg %p272
        $region112: #{tpu_custom_call.1} parent=105 // pred_check_branch
          %820 = sbr.rel (%p818) target = $region114
        $region113: #{tpu_custom_call.1} parent=105 // pred_region
          %s821 = sand.u32 %s257, 1
          %s822 = scalar_lea.sflag [#allocation6], %s821
          %s823 = sand.u32 %s257, 1
          %s824 = smul.addr %s823, 8
          %s825 = scalar_lea.vmem [#allocation5], %s824
          %826 = dma.done %s822, 128
        $region114: #{tpu_custom_call.1} parent=105 // pred_fallthru
          _
      $region106: #{tpu_custom_call.1} parent=5 // pred_fallthru
        _
    $region6: #{tpu_custom_call.1} parent=1 // loop_footer
      %s27 = sadd.s32 1, %s23
    $region7: #{tpu_custom_call.1} parent=1 // loop_footer_branch
      %22 = sbr.rel target = $region3
    $region8: #{tpu_custom_call.1} parent=1 // loop_exit
      _
    %827 = vsyncpa [#allocation4], 1
    %s828 = scalar_lea.sflag [#allocation4], 1
    %829 = vsyncpa %s828, 1
    %830 = vsyncpa [#allocation6], 1
    %s831 = scalar_lea.sflag [#allocation6], 1
    %832 = vsyncpa %s831, 1

</llo_original>
